<compile_context>
chip_gen: v6e
topology: v6e:2x2x1
jax: 0.10.0
libtpu: 0.0.40
codegen_flags: <defaults>
</compile_context>

<pallas_src>
import functools

import jax
import jax.numpy as jnp
from jax.experimental import pallas as pl
from jax.experimental.pallas import tpu as pltpu

LANE = 128


def _round_up(v: int, m: int) -> int:
    return ((v + m - 1) // m) * m


def _tpu_generation() -> int:
    """Best-effort TPU generation (5/6/7...); defaults to 6 if unknown."""
    try:
        kind = jax.devices()[0].device_kind.lower()
    except Exception:
        return 6
    for g in (7, 6, 5, 4):
        if f"v{g}" in kind:
            return g
    return 6


def _vmem_capacity_bytes() -> int:
    """Per-core VMEM capacity; falls back to the v7x minimum (64 MiB)."""
    try:
        cap = int(pltpu.get_tpu_info().vmem_capacity_bytes)
        if cap > 0:
            return cap
    except Exception:
        pass
    return 64 << 20


def _select_batch_tiling(batch: int, max_tb: int):
    """Pick (tb, b_pad, num_tiles) minimizing batch padding."""
    if batch <= max_tb:
        return batch, batch, 1                  # single full-batch block, no padding
    best = None
    for tb in (max_tb, 128, 64, 32):
        if tb > max_tb:
            continue
        b_pad = _round_up(batch, tb)
        key = (b_pad - batch, -tb)              # least waste, then largest tile
        if best is None or key < best[0]:
            best = (key, tb, b_pad)
    _, tb, b_pad = best
    return tb, b_pad, b_pad // tb


# ---------------------------------------------------------------------------
# Kernel
# ---------------------------------------------------------------------------
def dqn_kernel(x_ref,
               w1_ref, b1_ref,
               w2_ref, b2_ref,
               w3_ref, b3_ref,
               w4_ref, b4_ref,
               o_ref):
    """Fused MLP forward: fc1->relu->fc2->relu->fc3->relu->fc4.

    x arrives in its HBM dtype (f32) and is cast to bf16 in-kernel; weights are
    bf16 (MXU path) with f32 accumulation.  Bias add runs in f32, then the
    activation is down-cast to bf16 *before* the ReLU (identical numerics,
    half-width VPU work) to feed the next MXU stage.
    """
    h = x_ref[...].astype(jnp.bfloat16)

    h = jnp.dot(h, w1_ref[...], preferred_element_type=jnp.float32) + b1_ref[...]
    h = jnp.maximum(h.astype(jnp.bfloat16), 0.0)
    # TODO(synk): nn.Dropout(0.2) is identity in eval mode; training-mode dropout
    # would use pltpu.prng_seed + pltpu.prng_random_bits here.

    h = jnp.dot(h, w2_ref[...], preferred_element_type=jnp.float32) + b2_ref[...]
    h = jnp.maximum(h.astype(jnp.bfloat16), 0.0)

    h = jnp.dot(h, w3_ref[...], preferred_element_type=jnp.float32) + b3_ref[...]
    h = jnp.maximum(h.astype(jnp.bfloat16), 0.0)

    out = jnp.dot(h, w4_ref[...], preferred_element_type=jnp.float32) + b4_ref[...]
    o_ref[...] = out.astype(o_ref.dtype)


# ---------------------------------------------------------------------------
# Parameter prep (wrapper-side padding + bf16 cast, done once per param set)
# ---------------------------------------------------------------------------
def prepare_dqn_params(params):
    """Zero-pad hidden/output dims to multiples of 128 and cast weights to bf16.

    Layer 1's input dim is left UNPADDED so it matches the raw x.  Zero padding
    keeps the math exact: padded hidden units compute relu(0+0)=0 and feed zero
    weight rows downstream; padded output columns are sliced off by the caller.
    Biases stay f32 (added after the f32 accumulate), stored as (1, out_pad).
    """
    prepared = {}
    for i in range(1, 5):
        w = params[f"w{i}"]                      # (in, out) f32
        b = params[f"b{i}"]                      # (out,)    f32
        kin, kout = w.shape
        kin_p = kin if i == 1 else _round_up(kin, LANE)
        kout_p = _round_up(kout, LANE)
        wp = jnp.zeros((kin_p, kout_p), jnp.bfloat16)
        wp = wp.at[:kin, :kout].set(w.astype(jnp.bfloat16))
        bp = jnp.zeros((1, kout_p), jnp.float32)
        bp = bp.at[0, :kout].set(b)
        prepared[f"w{i}"] = wp
        prepared[f"b{i}"] = bp
    return prepared


# ---------------------------------------------------------------------------
# Forward wrapper
# ---------------------------------------------------------------------------
@functools.partial(jax.jit, static_argnames=("num_actions", "max_batch_tile"))
def dqn_forward(x, prepared, num_actions, max_batch_tile=None):
    batch, in_features = x.shape
    h1p = prepared["w1"].shape[1]
    h2p = prepared["w2"].shape[1]
    h3p = prepared["w3"].shape[1]
    ap = prepared["w4"].shape[1]

    gen = _tpu_generation()
    if max_batch_tile is None:
        # v5e: 4x128^2 MXU -> 128-row tiles; v6e/v7x: 256 fills the 256-wide MXU.
        max_tb = 128 if gen <= 5 else 256
    else:
        max_tb = max_batch_tile

    tb, b_pad, num_tiles = _select_batch_tiling(batch, max_tb)

    # Only pad the batch dim, only when the grid demands it (no K pad, no cast).
    if b_pad != batch:
        xp = jnp.zeros((b_pad, in_features), x.dtype)
        xp = xp.at[:batch, :].set(x)
    else:
        xp = x

    # x double-buffered by default; depth 3 on v6e where per-tile DMA ~ compute.
    x_pipe = pl.Buffered(3) if (gen == 6 and num_tiles > 2) else None

    in_specs = [pl.BlockSpec((tb, in_features), lambda i: (i, 0),
                             pipeline_mode=x_pipe)]
    operands = [xp]
    for layer in range(1, 5):
        w = prepared[f"w{layer}"]
        b = prepared[f"b{layer}"]
        # Constant index_map -> VMEM-resident across grid steps; single-buffer
        # (double-buffering a constant block is pure VMEM waste).
        in_specs.append(pl.BlockSpec(w.shape, lambda i: (0, 0),
                                     pipeline_mode=pl.Buffered(1)))
        in_specs.append(pl.BlockSpec(b.shape, lambda i: (0, 0),
                                     pipeline_mode=pl.Buffered(1)))
        operands.append(w)
        operands.append(b)

    out_spec = pl.BlockSpec((tb, ap), lambda i: (i, 0))

    # VMEM budget: resident weights (single-buffered) + x/out tile buffers
    # + headroom, clamped to the chip's real per-core VMEM capacity.
    weight_bytes = sum(int(prepared[f"w{l}"].size) * 2 +
                       int(prepared[f"b{l}"].size) * 4 for l in range(1, 5))
    x_bufs = 3 if x_pipe is not None else 2
    tile_bytes = x_bufs * tb * in_features * 4 + 2 * tb * ap * 4
    vmem_cap = _vmem_capacity_bytes()
    vmem_limit = int(min(max(weight_bytes + tile_bytes + (8 << 20), 32 << 20),
                         vmem_cap - (4 << 20)))

    flops = 2 * b_pad * (in_features * h1p + h1p * h2p + h2p * h3p + h3p * ap)
    bytes_accessed = weight_bytes + int(xp.size) * xp.dtype.itemsize + b_pad * ap * 4

    # Engage megacore ("parallel") only when there is more than one batch tile;
    # at small batch the kernel is weight-DMA bound and splitting buys nothing.
    dim_sem = ("parallel",) if num_tiles > 1 else ("arbitrary",)

    out_padded = pl.pallas_call(
        dqn_kernel,
        out_shape=jax.ShapeDtypeStruct((b_pad, ap), jnp.float32),
        grid=(num_tiles,),
        in_specs=in_specs,
        out_specs=out_spec,
        compiler_params=pltpu.CompilerParams(
            dimension_semantics=dim_sem,
            vmem_limit_bytes=vmem_limit),
        cost_estimate=pl.CostEstimate(
            flops=flops, transcendentals=0, bytes_accessed=bytes_accessed),
    )(*operands)

    return out_padded[:batch, :num_actions]


# ---------------------------------------------------------------------------
# Init + references
# ---------------------------------------------------------------------------
def init_dqn_params(key, input_size, hidden_size, num_actions):
    """Deterministic init mimicking nn.Linear's U(-1/sqrt(fan_in), 1/sqrt(fan_in)).

    Weights stored pre-transposed as (in, out); biases as (out,).
    """
    dims = [(input_size, hidden_size),
            (hidden_size, hidden_size),
            (hidden_size, hidden_size // 2),
            (hidden_size // 2, num_actions)]
    params = {}
    for i, (fan_in, fan_out) in enumerate(dims, start=1):
        key, kw, kb = jax.random.split(key, 3)
        bound = 1.0 / jnp.sqrt(jnp.float32(fan_in))
        params[f"w{i}"] = jax.random.uniform(
            kw, (fan_in, fan_out), jnp.float32, -bound, bound)
        params[f"b{i}"] = jax.random.uniform(
            kb, (fan_out,), jnp.float32, -bound, bound)
    return params


def dqn_reference_bf16(x, params):
    """Mirrors the kernel numerics: bf16 operands, f32 accumulate."""
    h = x.astype(jnp.bfloat16)
    for layer in range(1, 4):
        w = params[f"w{layer}"].astype(jnp.bfloat16)
        h = jnp.dot(h, w, preferred_element_type=jnp.float32) + params[f"b{layer}"]
        h = jnp.maximum(h, 0.0).astype(jnp.bfloat16)
    w4 = params["w4"].astype(jnp.bfloat16)
    return jnp.dot(h, w4, preferred_element_type=jnp.float32) + params["b4"]


def dqn_reference_f32(x, params):
    h = jnp.maximum(x @ params["w1"] + params["b1"], 0.0)
    h = jnp.maximum(h @ params["w2"] + params["b2"], 0.0)
    h = jnp.maximum(h @ params["w3"] + params["b3"], 0.0)
    return h @ params["w4"] + params["b4"]


# ---------------------------------------------------------------------------
if __name__ == "__main__":
    # Small shapes consistent with the module's constructor (defaults are
    # 2049 / 512 / 3); kept small and odd here to exercise the padding path.
    batch = 8
    input_size = 257
    hidden_size = 64
    num_actions = 3

    key = jax.random.PRNGKey(0)
    key, kx = jax.random.split(key)
    x = jax.random.normal(kx, (batch, input_size), jnp.float32)
    params = init_dqn_params(key, input_size, hidden_size, num_actions)
    prepared = prepare_dqn_params(params)

    # Small-batch path: single full-batch block, grid=(1,), no padding of x.
    out = dqn_forward(x, prepared, num_actions)
    out = jax.block_until_ready(out)
    assert out.shape == (batch, num_actions)

    ref_bf16 = dqn_reference_bf16(x, params)
    assert jnp.allclose(out, ref_bf16, atol=5e-3, rtol=5e-3), \
        "mismatch vs bf16-matched reference (small batch)"
    ref_f32 = dqn_reference_f32(x, params)
    assert jnp.allclose(out, ref_f32, atol=1e-1, rtol=1e-1), \
        "mismatch vs f32 reference (small batch)"

    # Multi-tile path (grid > 1 + batch padding), still small: force a 64-row
    # max tile so batch=150 selects tb=32, b_pad=160, 5 grid steps.
    batch2 = 150
    key, kx2 = jax.random.split(key)
    x2 = jax.random.normal(kx2, (batch2, input_size), jnp.float32)
    out2 = jax.block_until_ready(
        dqn_forward(x2, prepared, num_actions, max_batch_tile=64))
    assert out2.shape == (batch2, num_actions)
    ref2 = dqn_reference_bf16(x2, params)
    assert jnp.allclose(out2, ref2, atol=5e-3, rtol=5e-3), \
        "mismatch vs bf16-matched reference (tiled batch)"

    print("KERNEL_OK")
</pallas_src>

<mosaic_0001>
module attributes {stable_mosaic.version = 11 : i64} {
  func.func @dqn_kernel(%arg0: i32, %arg1: memref<8x257xf32, #tpu.memory_space<vmem>>, %arg2: memref<257x128xbf16, #tpu.memory_space<vmem>>, %arg3: memref<1x128xf32, #tpu.memory_space<vmem>>, %arg4: memref<128x128xbf16, #tpu.memory_space<vmem>>, %arg5: memref<1x128xf32, #tpu.memory_space<vmem>>, %arg6: memref<128x128xbf16, #tpu.memory_space<vmem>>, %arg7: memref<1x128xf32, #tpu.memory_space<vmem>>, %arg8: memref<128x128xbf16, #tpu.memory_space<vmem>>, %arg9: memref<1x128xf32, #tpu.memory_space<vmem>>, %arg10: memref<8x128xf32, #tpu.memory_space<vmem>>) attributes {dimension_semantics = [#tpu.dimension_semantics<arbitrary>], iteration_bounds = array<i64: 1>, scalar_prefetch = 0 : i64, scratch_operands = 0 : i64, tpu.core_type = #tpu.core_type<tc>, window_params = [{transform_indices = @transform_0, window_bounds = array<i64: 8, 257>}, {pipeline_mode = #tpu.pipeline_mode<synchronous>, transform_indices = @transform_1, window_bounds = array<i64: 257, 128>}, {pipeline_mode = #tpu.pipeline_mode<synchronous>, transform_indices = @transform_2, window_bounds = array<i64: 1, 128>}, {pipeline_mode = #tpu.pipeline_mode<synchronous>, transform_indices = @transform_3, window_bounds = array<i64: 128, 128>}, {pipeline_mode = #tpu.pipeline_mode<synchronous>, transform_indices = @transform_4, window_bounds = array<i64: 1, 128>}, {pipeline_mode = #tpu.pipeline_mode<synchronous>, transform_indices = @transform_5, window_bounds = array<i64: 128, 128>}, {pipeline_mode = #tpu.pipeline_mode<synchronous>, transform_indices = @transform_6, window_bounds = array<i64: 1, 128>}, {pipeline_mode = #tpu.pipeline_mode<synchronous>, transform_indices = @transform_7, window_bounds = array<i64: 128, 128>}, {pipeline_mode = #tpu.pipeline_mode<synchronous>, transform_indices = @transform_8, window_bounds = array<i64: 1, 128>}, {transform_indices = @transform_9, window_bounds = array<i64: 8, 128>}]} {
    %c0 = arith.constant 0 : index
    %c0_0 = arith.constant 0 : index
    %0 = vector.load %arg1[%c0, %c0_0] : memref<8x257xf32, #tpu.memory_space<vmem>>, vector<8x257xf32>
    %1 = arith.truncf %0 : vector<8x257xf32> to vector<8x257xbf16>
    %c0_1 = arith.constant 0 : index
    %c0_2 = arith.constant 0 : index
    %2 = vector.load %arg2[%c0_1, %c0_2] : memref<257x128xbf16, #tpu.memory_space<vmem>>, vector<257x128xbf16>
    %cst = arith.constant dense<0.000000e+00> : vector<8x128xf32>
    %3 = tpu.matmul %1, %2, %cst {dimension_numbers = #tpu.dot_dimension_numbers<[1], [0], [0], [1], [0, 0, 1, 1], [], []>} : vector<8x257xbf16>, vector<257x128xbf16>, vector<8x128xf32> -> vector<8x128xf32>
    %c0_3 = arith.constant 0 : index
    %c0_4 = arith.constant 0 : index
    %4 = vector.load %arg3[%c0_3, %c0_4] : memref<1x128xf32, #tpu.memory_space<vmem>>, vector<1x128xf32>
    %5 = vector.broadcast %4 : vector<1x128xf32> to vector<8x128xf32>
    %6 = arith.addf %3, %5 : vector<8x128xf32>
    %7 = arith.truncf %6 : vector<8x128xf32> to vector<8x128xbf16>
    %cst_5 = arith.constant 0.000000e+00 : bf16
    %8 = vector.broadcast %cst_5 : bf16 to vector<8x128xbf16>
    %9 = arith.maximumf %7, %8 : vector<8x128xbf16>
    %c0_6 = arith.constant 0 : index
    %c0_7 = arith.constant 0 : index
    %10 = vector.load %arg4[%c0_6, %c0_7] : memref<128x128xbf16, #tpu.memory_space<vmem>>, vector<128x128xbf16>
    %cst_8 = arith.constant dense<0.000000e+00> : vector<8x128xf32>
    %11 = tpu.matmul %9, %10, %cst_8 {dimension_numbers = #tpu.dot_dimension_numbers<[1], [0], [0], [1], [0, 0, 1, 1], [], []>} : vector<8x128xbf16>, vector<128x128xbf16>, vector<8x128xf32> -> vector<8x128xf32>
    %c0_9 = arith.constant 0 : index
    %c0_10 = arith.constant 0 : index
    %12 = vector.load %arg5[%c0_9, %c0_10] : memref<1x128xf32, #tpu.memory_space<vmem>>, vector<1x128xf32>
    %13 = vector.broadcast %12 : vector<1x128xf32> to vector<8x128xf32>
    %14 = arith.addf %11, %13 : vector<8x128xf32>
    %15 = arith.truncf %14 : vector<8x128xf32> to vector<8x128xbf16>
    %cst_11 = arith.constant 0.000000e+00 : bf16
    %16 = vector.broadcast %cst_11 : bf16 to vector<8x128xbf16>
    %17 = arith.maximumf %15, %16 : vector<8x128xbf16>
    %c0_12 = arith.constant 0 : index
    %c0_13 = arith.constant 0 : index
    %18 = vector.load %arg6[%c0_12, %c0_13] : memref<128x128xbf16, #tpu.memory_space<vmem>>, vector<128x128xbf16>
    %cst_14 = arith.constant dense<0.000000e+00> : vector<8x128xf32>
    %19 = tpu.matmul %17, %18, %cst_14 {dimension_numbers = #tpu.dot_dimension_numbers<[1], [0], [0], [1], [0, 0, 1, 1], [], []>} : vector<8x128xbf16>, vector<128x128xbf16>, vector<8x128xf32> -> vector<8x128xf32>
    %c0_15 = arith.constant 0 : index
    %c0_16 = arith.constant 0 : index
    %20 = vector.load %arg7[%c0_15, %c0_16] : memref<1x128xf32, #tpu.memory_space<vmem>>, vector<1x128xf32>
    %21 = vector.broadcast %20 : vector<1x128xf32> to vector<8x128xf32>
    %22 = arith.addf %19, %21 : vector<8x128xf32>
    %23 = arith.truncf %22 : vector<8x128xf32> to vector<8x128xbf16>
    %cst_17 = arith.constant 0.000000e+00 : bf16
    %24 = vector.broadcast %cst_17 : bf16 to vector<8x128xbf16>
    %25 = arith.maximumf %23, %24 : vector<8x128xbf16>
    %c0_18 = arith.constant 0 : index
    %c0_19 = arith.constant 0 : index
    %26 = vector.load %arg8[%c0_18, %c0_19] : memref<128x128xbf16, #tpu.memory_space<vmem>>, vector<128x128xbf16>
    %cst_20 = arith.constant dense<0.000000e+00> : vector<8x128xf32>
    %27 = tpu.matmul %25, %26, %cst_20 {dimension_numbers = #tpu.dot_dimension_numbers<[1], [0], [0], [1], [0, 0, 1, 1], [], []>} : vector<8x128xbf16>, vector<128x128xbf16>, vector<8x128xf32> -> vector<8x128xf32>
    %c0_21 = arith.constant 0 : index
    %c0_22 = arith.constant 0 : index
    %28 = vector.load %arg9[%c0_21, %c0_22] : memref<1x128xf32, #tpu.memory_space<vmem>>, vector<1x128xf32>
    %29 = vector.broadcast %28 : vector<1x128xf32> to vector<8x128xf32>
    %30 = arith.addf %27, %29 : vector<8x128xf32>
    %c0_23 = arith.constant 0 : index
    %c0_24 = arith.constant 0 : index
    %31 = vector.load %arg10[%c0_23, %c0_24] : memref<8x128xf32, #tpu.memory_space<vmem>>, vector<8x128xf32>
    tpu.vector_store %arg10[%c0_23, %c0_24], %30 {strides = array<i32>} : memref<8x128xf32, #tpu.memory_space<vmem>>, vector<8x128xf32>,
    return
  }
  func.func @transform_0(%arg0: i32) -> (i32, i32) {
    %c0_i32 = arith.constant 0 : i32
    %c0_i32_0 = arith.constant 0 : i32
    return %arg0, %c0_i32 : i32, i32
  }
  func.func @transform_1(%arg0: i32) -> (i32, i32) {
    %c0_i32 = arith.constant 0 : i32
    %c0_i32_0 = arith.constant 0 : i32
    %c0_i32_1 = arith.constant 0 : i32
    return %c0_i32, %c0_i32_0 : i32, i32
  }
  func.func @transform_2(%arg0: i32) -> (i32, i32) {
    %c0_i32 = arith.constant 0 : i32
    %c0_i32_0 = arith.constant 0 : i32
    %c0_i32_1 = arith.constant 0 : i32
    return %c0_i32, %c0_i32_0 : i32, i32
  }
  func.func @transform_3(%arg0: i32) -> (i32, i32) {
    %c0_i32 = arith.constant 0 : i32
    %c0_i32_0 = arith.constant 0 : i32
    %c0_i32_1 = arith.constant 0 : i32
    return %c0_i32, %c0_i32_0 : i32, i32
  }
  func.func @transform_4(%arg0: i32) -> (i32, i32) {
    %c0_i32 = arith.constant 0 : i32
    %c0_i32_0 = arith.constant 0 : i32
    %c0_i32_1 = arith.constant 0 : i32
    return %c0_i32, %c0_i32_0 : i32, i32
  }
  func.func @transform_5(%arg0: i32) -> (i32, i32) {
    %c0_i32 = arith.constant 0 : i32
    %c0_i32_0 = arith.constant 0 : i32
    %c0_i32_1 = arith.constant 0 : i32
    return %c0_i32, %c0_i32_0 : i32, i32
  }
  func.func @transform_6(%arg0: i32) -> (i32, i32) {
    %c0_i32 = arith.constant 0 : i32
    %c0_i32_0 = arith.constant 0 : i32
    %c0_i32_1 = arith.constant 0 : i32
    return %c0_i32, %c0_i32_0 : i32, i32
  }
  func.func @transform_7(%arg0: i32) -> (i32, i32) {
    %c0_i32 = arith.constant 0 : i32
    %c0_i32_0 = arith.constant 0 : i32
    %c0_i32_1 = arith.constant 0 : i32
    return %c0_i32, %c0_i32_0 : i32, i32
  }
  func.func @transform_8(%arg0: i32) -> (i32, i32) {
    %c0_i32 = arith.constant 0 : i32
    %c0_i32_0 = arith.constant 0 : i32
    %c0_i32_1 = arith.constant 0 : i32
    return %c0_i32, %c0_i32_0 : i32, i32
  }
  func.func @transform_9(%arg0: i32) -> (i32, i32) {
    %c0_i32 = arith.constant 0 : i32
    %c0_i32_0 = arith.constant 0 : i32
    return %arg0, %c0_i32 : i32, i32
  }
}

</mosaic_0001>

<llo_original>
// kernel: dqn_forward.1
$region0: #{dqn_forward.1}
  #allocation0 [shape = 'u32[]', space=smem, size = 0x4, offset = 0x4, fixed_abs, tag = 'smem constant byte address 0x4 - core index']
  #allocation1 [shape = 'u32[144,128]{1,0:T(1,128)}', space=vmem, size = 0x12000, scoped, tag = 'internal scratch']
  %s0 = inlined_call_operand.hbm [shape: f32[8,257], index: 0, kind: input, shape index: {}]
  %s1 = inlined_call_operand.hbm [shape: bf16[257,128], index: 1, kind: input, shape index: {}]
  %s2 = inlined_call_operand.vmem [shape: f32[1,128], index: 2, kind: input, shape index: {}]
  %s3 = inlined_call_operand.hbm [shape: bf16[128,128], index: 3, kind: input, shape index: {}]
  %s4 = inlined_call_operand.vmem [shape: f32[1,128], index: 4, kind: input, shape index: {}]
  %s5 = inlined_call_operand.hbm [shape: bf16[128,128], index: 5, kind: input, shape index: {}]
  %s6 = inlined_call_operand.vmem [shape: f32[1,128], index: 6, kind: input, shape index: {}]
  %s7 = inlined_call_operand.hbm [shape: bf16[128,128], index: 7, kind: input, shape index: {}]
  %s8 = inlined_call_operand.vmem [shape: f32[1,128], index: 8, kind: input, shape index: {}]
  %s9 = inlined_call_operand.vmem [shape: f32[8,128], index: 9, kind: output, shape index: {}]
  %s10 = sld [smem:[#allocation0]]
  $region66: #{dqn_forward.1} parent=0
    _
  %s12 = ssub.s32 1, %s10
  %s13 = scalar_select 0, %s12, %s10
  $region1: #{dqn_forward.1} parent=0
    #allocation2 [shape = 'u8[12288]{0}', space=vmem, size = 0x3000, scoped, tag = 'input window, operand 0, single buffered']
    #allocation3 [shape = 's32[1]{0}', space=sflag, size = 0x4, scoped, tag = 'scoped memory for dqn_forward.1']
    #allocation4 [shape = 'u8[67584]{0}', space=vmem, size = 0x10800, scoped, tag = 'input window, operand 1, single buffered']
    #allocation5 [shape = 's32[1]{0}', space=sflag, size = 0x4, scoped, tag = 'scoped memory for dqn_forward.1']
    #allocation6 [shape = 'u8[32768]{0}', space=vmem, size = 0x8000, scoped, tag = 'input window, operand 3, single buffered']
    #allocation7 [shape = 'u8[32768]{0}', space=vmem, size = 0x8000, scoped, tag = 'input window, operand 5, single buffered']
    #allocation8 [shape = 's32[1]{0}', space=sflag, size = 0x4, scoped, tag = 'scoped memory for dqn_forward.1']
    #allocation9 [shape = 'u8[32768]{0}', space=vmem, size = 0x8000, scoped, tag = 'input window, operand 7, single buffered']
    %14 = vsyncpa [#allocation3], 0
    %15 = vsyncpa [#allocation5], 0
    %16 = vsyncpa [#allocation8], 0
    // Predicated region
    $region2: #{dqn_forward.1} parent=1 // pred_check
      _
    $region3: #{dqn_forward.1} parent=1 // pred_check_branch
      %18 = sbr.rel (0) target = $region5
    $region4: #{dqn_forward.1} parent=1 // pred_region
      %s20 = ssub.s32 384, 384
      %21 = vsyncadd [#allocation3], %s20
      %s23 = sshll.u32 [#allocation2], 4
      %s24 = int_to_ptr.vmem [resolvable:$true] %s23
      %26 = dma.hbm_to_vmem [thread:$0]  %s0, 384, %s24, [#allocation3]
    $region5: #{dqn_forward.1} parent=1 // pred_fallthru
      _
    // Predicated region
    $region6: #{dqn_forward.1} parent=1 // pred_check
      _
    $region7: #{dqn_forward.1} parent=1 // pred_check_branch
      %28 = sbr.rel (0) target = $region9
    $region8: #{dqn_forward.1} parent=1 // pred_region
      %s30 = ssub.s32 2112, 2112
      %31 = vsyncadd [#allocation5], %s30
      %s32 = sshll.u32 [#allocation4], 4
      %s33 = int_to_ptr.vmem [resolvable:$true] %s32
      %38 = dma.hbm_to_vmem [thread:$0]  %s1, 2112, %s33, [#allocation5], 64, 64, 4
    $region9: #{dqn_forward.1} parent=1 // pred_fallthru
      _
    // Predicated region
    $region10: #{dqn_forward.1} parent=1 // pred_check
      _
    $region11: #{dqn_forward.1} parent=1 // pred_check_branch
      %40 = sbr.rel (0) target = $region13
    $region12: #{dqn_forward.1} parent=1 // pred_region
      _
    $region13: #{dqn_forward.1} parent=1 // pred_fallthru
      _
    // Predicated region
    $region14: #{dqn_forward.1} parent=1 // pred_check
      _
    $region15: #{dqn_forward.1} parent=1 // pred_check_branch
      %42 = sbr.rel (0) target = $region17
    $region16: #{dqn_forward.1} parent=1 // pred_region
      %s44 = ssub.s32 1024, 1024
      %45 = vsyncadd [#allocation5], %s44
      %s46 = sshll.u32 [#allocation6], 4
      %s47 = int_to_ptr.vmem [resolvable:$true] %s46
      %52 = dma.hbm_to_vmem [thread:$0]  %s3, 1024, %s47, [#allocation5], 64, 64, 4
    $region17: #{dqn_forward.1} parent=1 // pred_fallthru
      _
    // Predicated region
    $region18: #{dqn_forward.1} parent=1 // pred_check
      _
    $region19: #{dqn_forward.1} parent=1 // pred_check_branch
      %54 = sbr.rel (0) target = $region21
    $region20: #{dqn_forward.1} parent=1 // pred_region
      _
    $region21: #{dqn_forward.1} parent=1 // pred_fallthru
      _
    // Predicated region
    $region22: #{dqn_forward.1} parent=1 // pred_check
      _
    $region23: #{dqn_forward.1} parent=1 // pred_check_branch
      %56 = sbr.rel (0) target = $region25
    $region24: #{dqn_forward.1} parent=1 // pred_region
      %s58 = ssub.s32 1024, 1024
      %59 = vsyncadd [#allocation8], %s58
      %s60 = sshll.u32 [#allocation7], 4
      %s61 = int_to_ptr.vmem [resolvable:$true] %s60
      %66 = dma.hbm_to_vmem [thread:$0]  %s5, 1024, %s61, [#allocation8], 64, 64, 4
    $region25: #{dqn_forward.1} parent=1 // pred_fallthru
      _
    // Predicated region
    $region26: #{dqn_forward.1} parent=1 // pred_check
      _
    $region27: #{dqn_forward.1} parent=1 // pred_check_branch
      %68 = sbr.rel (0) target = $region29
    $region28: #{dqn_forward.1} parent=1 // pred_region
      _
    $region29: #{dqn_forward.1} parent=1 // pred_fallthru
      _
    // Predicated region
    $region30: #{dqn_forward.1} parent=1 // pred_check
      _
    $region31: #{dqn_forward.1} parent=1 // pred_check_branch
      %70 = sbr.rel (0) target = $region33
    $region32: #{dqn_forward.1} parent=1 // pred_region
      %s72 = ssub.s32 1024, 1024
      %73 = vsyncadd [#allocation8], %s72
      %s74 = sshll.u32 [#allocation9], 4
      %s75 = int_to_ptr.vmem [resolvable:$true] %s74
      %80 = dma.hbm_to_vmem [thread:$0]  %s7, 1024, %s75, [#allocation8], 64, 64, 4
    $region33: #{dqn_forward.1} parent=1 // pred_fallthru
      _
    // Predicated region
    $region34: #{dqn_forward.1} parent=1 // pred_check
      _
    $region35: #{dqn_forward.1} parent=1 // pred_check_branch
      %82 = sbr.rel (0) target = $region37
    $region36: #{dqn_forward.1} parent=1 // pred_region
      _
    $region37: #{dqn_forward.1} parent=1 // pred_fallthru
      _
    // Predicated region
    $region38: #{dqn_forward.1} parent=1 // pred_check
      _
    $region39: #{dqn_forward.1} parent=1 // pred_check_branch
      %84 = sbr.rel (0) target = $region41
    $region40: #{dqn_forward.1} parent=1 // pred_region
      %85 = dma.done [#allocation3], 384
    $region41: #{dqn_forward.1} parent=1 // pred_fallthru
      _
    // Predicated region
    $region42: #{dqn_forward.1} parent=1 // pred_check
      _
    $region43: #{dqn_forward.1} parent=1 // pred_check_branch
      %87 = sbr.rel (0) target = $region45
    $region44: #{dqn_forward.1} parent=1 // pred_region
      %88 = dma.done [#allocation5], 2112
    $region45: #{dqn_forward.1} parent=1 // pred_fallthru
      _
    // Predicated region
    $region46: #{dqn_forward.1} parent=1 // pred_check
      _
    $region47: #{dqn_forward.1} parent=1 // pred_check_branch
      %90 = sbr.rel (0) target = $region49
    $region48: #{dqn_forward.1} parent=1 // pred_region
      %91 = dma.done [#allocation5], 1024
    $region49: #{dqn_forward.1} parent=1 // pred_fallthru
      _
    // Predicated region
    $region50: #{dqn_forward.1} parent=1 // pred_check
      _
    $region51: #{dqn_forward.1} parent=1 // pred_check_branch
      %93 = sbr.rel (0) target = $region53
    $region52: #{dqn_forward.1} parent=1 // pred_region
      %94 = dma.done [#allocation8], 1024
    $region53: #{dqn_forward.1} parent=1 // pred_fallthru
      _
    // Predicated region
    $region54: #{dqn_forward.1} parent=1 // pred_check
      _
    $region55: #{dqn_forward.1} parent=1 // pred_check_branch
      %96 = sbr.rel (0) target = $region57
    $region56: #{dqn_forward.1} parent=1 // pred_region
      %97 = dma.done [#allocation8], 1024
    $region57: #{dqn_forward.1} parent=1 // pred_fallthru
      _
    %v99 = vld [vmem:[#allocation2] sm:$0xff]
    %v100 = vld [vmem:[#allocation2 + $0x8] sm:$0xff]
    %v101 = vld [vmem:[#allocation2 + $0x10] sm:$0xff]
    %v102 = vpack.c.bf16 %v99, %v99
    %v103 = vpack.c.bf16 %v100, %v100
    %v104 = vpack.c.bf16 %v101, %v101
    %v105 = vld [vmem:[#allocation4] sm:$0xf]
    %v106 = vld [vmem:[#allocation4 + $0x4] sm:$0xf]
    %v107 = vld [vmem:[#allocation4 + $0x8] sm:$0xf]
    %v108 = vld [vmem:[#allocation4 + $0xc] sm:$0xf]
    %v109 = vld [vmem:[#allocation4 + $0x10] sm:$0xf]
    %v110 = vld [vmem:[#allocation4 + $0x14] sm:$0xf]
    %v111 = vld [vmem:[#allocation4 + $0x18] sm:$0xf]
    %v112 = vld [vmem:[#allocation4 + $0x1c] sm:$0xf]
    %v113 = vld [vmem:[#allocation4 + $0x20] sm:$0xf]
    %v114 = vld [vmem:[#allocation4 + $0x24] sm:$0xf]
    %v115 = vld [vmem:[#allocation4 + $0x28] sm:$0xf]
    %v116 = vld [vmem:[#allocation4 + $0x2c] sm:$0xf]
    %v117 = vld [vmem:[#allocation4 + $0x30] sm:$0xf]
    %v118 = vld [vmem:[#allocation4 + $0x34] sm:$0xf]
    %v119 = vld [vmem:[#allocation4 + $0x38] sm:$0xf]
    %v120 = vld [vmem:[#allocation4 + $0x3c] sm:$0xf]
    %v121 = vld [vmem:[#allocation4 + $0x40] sm:$0xf]
    %v122 = vld [vmem:[#allocation4 + $0x44] sm:$0xf]
    %v123 = vld [vmem:[#allocation4 + $0x48] sm:$0xf]
    %v124 = vld [vmem:[#allocation4 + $0x4c] sm:$0xf]
    %v125 = vld [vmem:[#allocation4 + $0x50] sm:$0xf]
    %v126 = vld [vmem:[#allocation4 + $0x54] sm:$0xf]
    %v127 = vld [vmem:[#allocation4 + $0x58] sm:$0xf]
    %v128 = vld [vmem:[#allocation4 + $0x5c] sm:$0xf]
    %v129 = vld [vmem:[#allocation4 + $0x60] sm:$0xf]
    %v130 = vld [vmem:[#allocation4 + $0x64] sm:$0xf]
    %v131 = vld [vmem:[#allocation4 + $0x68] sm:$0xf]
    %v132 = vld [vmem:[#allocation4 + $0x6c] sm:$0xf]
    %v133 = vld [vmem:[#allocation4 + $0x70] sm:$0xf]
    %v134 = vld [vmem:[#allocation4 + $0x74] sm:$0xf]
    %v135 = vld [vmem:[#allocation4 + $0x78] sm:$0xf]
    %v136 = vld [vmem:[#allocation4 + $0x7c] sm:$0xf]
    %v137 = vld [vmem:[#allocation4 + $0x80] sm:$0x1]
    %v138 = vld [vmem:[%s2] sm:$0x1]
    %v140 = vlaneseq
    %v141 = vshrl.u32 %v140, 7
    %v142 = vsub.s32 0, %v141
    %v143 = vrot.slane %v138, %v142
    %v178 = vunpack.c.l.b16 %v105
    %v179 = vunpack.c.l.b16 %v106
    %v180 = vunpack.c.l.b16 %v107
    %v181 = vunpack.c.l.b16 %v108
    %v182 = vunpack.c.l.b16 %v109
    %v183 = vunpack.c.l.b16 %v110
    %v184 = vunpack.c.l.b16 %v111
    %v185 = vunpack.c.l.b16 %v112
    %v186 = vunpack.c.l.b16 %v113
    %v187 = vunpack.c.l.b16 %v114
    %v188 = vunpack.c.l.b16 %v115
    %v189 = vunpack.c.l.b16 %v116
    %v190 = vunpack.c.l.b16 %v117
    %v191 = vunpack.c.l.b16 %v118
    %v192 = vunpack.c.l.b16 %v119
    %v193 = vunpack.c.l.b16 %v120
    %v194 = vunpack.c.l.b16 %v121
    %v195 = vunpack.c.l.b16 %v122
    %v196 = vunpack.c.l.b16 %v123
    %v197 = vunpack.c.l.b16 %v124
    %v198 = vunpack.c.l.b16 %v125
    %v199 = vunpack.c.l.b16 %v126
    %v200 = vunpack.c.l.b16 %v127
    %v201 = vunpack.c.l.b16 %v128
    %v202 = vunpack.c.l.b16 %v129
    %v203 = vunpack.c.l.b16 %v130
    %v204 = vunpack.c.l.b16 %v131
    %v205 = vunpack.c.l.b16 %v132
    %v206 = vunpack.c.l.b16 %v133
    %v207 = vunpack.c.l.b16 %v134
    %v208 = vunpack.c.l.b16 %v135
    %v209 = vunpack.c.l.b16 %v136
    %v210 = vunpack.c.l.b16 %v137
    %v211 = vpack.c.b16 %v179, %v178
    %v212 = vpack.c.b16 %v181, %v180
    %v213 = vpack.c.b16 %v183, %v182
    %v214 = vpack.c.b16 %v185, %v184
    %v215 = vpack.c.b16 %v187, %v186
    %v216 = vpack.c.b16 %v189, %v188
    %v217 = vpack.c.b16 %v191, %v190
    %v218 = vpack.c.b16 %v193, %v192
    %v219 = vpack.c.b16 %v195, %v194
    %v220 = vpack.c.b16 %v197, %v196
    %v221 = vpack.c.b16 %v199, %v198
    %v222 = vpack.c.b16 %v201, %v200
    %v223 = vpack.c.b16 %v203, %v202
    %v224 = vpack.c.b16 %v205, %v204
    %v225 = vpack.c.b16 %v207, %v206
    %v226 = vpack.c.b16 %v209, %v208
    %v227 = vpack.c.b16 %v210, %v210
    %vm244 = vcmask 7168
    %v246 = vsel %vm244, %v104, 0
    %vm248 = vcmask 1040384
    %v249 = vsel 0, 4294967295, 65535
    %v250 = vsel %vm248, %v249, 0
    %v252 = vand.u32 %v227, %v250
    %254 = vmatprep.subr.bf16.mxu0 0
    %255 = vmatpush1.bf16.msra.mxu0 %v218
    %256 = vmatprep.subr.bf16.mxu0 0
    %257 = vmatpush1.bf16.msra.mxu0 %v217
    %258 = vmatprep.subr.bf16.mxu0 0
    %259 = vmatpush1.bf16.msra.mxu0 %v216
    %260 = vmatprep.subr.bf16.mxu0 0
    %261 = vmatpush1.bf16.msra.mxu0 %v215
    %262 = vmatprep.subr.bf16.mxu0 0
    %263 = vmatpush1.bf16.msra.mxu0 %v214
    %264 = vmatprep.subr.bf16.mxu0 0
    %265 = vmatpush1.bf16.msra.mxu0 %v213
    %266 = vmatprep.subr.bf16.mxu0 0
    %267 = vmatpush1.bf16.msra.mxu0 %v212
    %268 = vmatprep.subr.bf16.mxu0 0
    %269 = vmatpush1.bf16.msra.mxu0 %v211
    %270 = vmatprep.subr.bf16.mxu0 0
    %271 = vmatpush2.bf16.msra.mxu0 %v226
    %272 = vmatprep.subr.bf16.mxu0 0
    %273 = vmatpush2.bf16.msra.mxu0 %v225
    %274 = vmatprep.subr.bf16.mxu0 0
    %275 = vmatpush2.bf16.msra.mxu0 %v224
    %276 = vmatprep.subr.bf16.mxu0 0
    %277 = vmatpush2.bf16.msra.mxu0 %v223
    %278 = vmatprep.subr.bf16.mxu0 0
    %279 = vmatpush2.bf16.msra.mxu0 %v222
    %280 = vmatprep.subr.bf16.mxu0 0
    %281 = vmatpush2.bf16.msra.mxu0 %v221
    %282 = vmatprep.subr.bf16.mxu0 0
    %283 = vmatpush2.bf16.msra.mxu0 %v220
    %284 = vmatprep.subr.bf16.mxu0 0
    %285 = vmatpush2.bf16.msra.mxu0 %v219
    %286 = vmatprep.mubr.bf16.mxu0 %v103
    %287 = vmatmul.mubr.bf16.gmra.mxu0 %v102
    %v288 = vpop.f32.mrf.mxu0
    %v289 = vadd.f32 %v143, %v288
    %v290 = vpop.f32.mrf.mxu0
    %v291 = vpop.f32.mrf.mxu0
    %v292 = vpop.f32.mrf.mxu0
    %293 = vdwg.mxu0
    %294 = vmatprep.subr.bf16.mxu0 0
    %295 = vmatpush1.bf16.msra.mxu0 0
    %296 = vmatprep.subr.bf16.mxu0 0
    %297 = vmatpush1.bf16.msra.mxu0 0
    %298 = vmatprep.subr.bf16.mxu0 0
    %299 = vmatpush1.bf16.msra.mxu0 0
    %300 = vmatprep.subr.bf16.mxu0 0
    %301 = vmatpush1.bf16.msra.mxu0 0
    %302 = vmatprep.subr.bf16.mxu0 0
    %303 = vmatpush1.bf16.msra.mxu0 0
    %304 = vmatprep.subr.bf16.mxu0 0
    %305 = vmatpush1.bf16.msra.mxu0 0
    %306 = vmatprep.subr.bf16.mxu0 0
    %307 = vmatpush1.bf16.msra.mxu0 0
    %308 = vmatprep.subr.bf16.mxu0 0
    %309 = vmatpush1.bf16.msra.mxu0 %v252
    %310 = vmatprep.subr.bf16.mxu0 0
    %311 = vmatpush2.bf16.msra.mxu0 0
    %312 = vmatprep.subr.bf16.mxu0 0
    %313 = vmatpush2.bf16.msra.mxu0 0
    %314 = vmatprep.subr.bf16.mxu0 0
    %315 = vmatpush2.bf16.msra.mxu0 0
    %316 = vmatprep.subr.bf16.mxu0 0
    %317 = vmatpush2.bf16.msra.mxu0 0
    %318 = vmatprep.subr.bf16.mxu0 0
    %319 = vmatpush2.bf16.msra.mxu0 0
    %320 = vmatprep.subr.bf16.mxu0 0
    %321 = vmatpush2.bf16.msra.mxu0 0
    %322 = vmatprep.subr.bf16.mxu0 0
    %323 = vmatpush2.bf16.msra.mxu0 0
    %324 = vmatprep.subr.bf16.mxu0 0
    %325 = vmatpush2.bf16.msra.mxu0 0
    %326 = vmatprep.mubr.bf16.mxu0 0
    %327 = vmatmul.mubr.bf16.gmra.mxu0 %v246
    %v328 = vpop.f32.mrf.mxu0
    %v329 = vadd.f32 %v289, %v328
    %v330 = vpop.f32.mrf.mxu0
    %v331 = vpop.f32.mrf.mxu0
    %v332 = vpop.f32.mrf.mxu0
    %333 = vdwg.mxu0
    %v334 = vpack.c.bf16 %v329, %v329
    %v335 = vmax.bf16 %v334, 0
    %v336 = vld [vmem:[#allocation6] sm:$0xf]
    %v337 = vld [vmem:[#allocation6 + $0x4] sm:$0xf]
    %v338 = vld [vmem:[#allocation6 + $0x8] sm:$0xf]
    %v339 = vld [vmem:[#allocation6 + $0xc] sm:$0xf]
    %v340 = vld [vmem:[#allocation6 + $0x10] sm:$0xf]
    %v341 = vld [vmem:[#allocation6 + $0x14] sm:$0xf]
    %v342 = vld [vmem:[#allocation6 + $0x18] sm:$0xf]
    %v343 = vld [vmem:[#allocation6 + $0x1c] sm:$0xf]
    %v344 = vld [vmem:[#allocation6 + $0x20] sm:$0xf]
    %v345 = vld [vmem:[#allocation6 + $0x24] sm:$0xf]
    %v346 = vld [vmem:[#allocation6 + $0x28] sm:$0xf]
    %v347 = vld [vmem:[#allocation6 + $0x2c] sm:$0xf]
    %v348 = vld [vmem:[#allocation6 + $0x30] sm:$0xf]
    %v349 = vld [vmem:[#allocation6 + $0x34] sm:$0xf]
    %v350 = vld [vmem:[#allocation6 + $0x38] sm:$0xf]
    %v351 = vld [vmem:[#allocation6 + $0x3c] sm:$0xf]
    %v352 = vld [vmem:[%s4] sm:$0x1]
    %v354 = vlaneseq
    %v355 = vshrl.u32 %v354, 7
    %v356 = vsub.s32 0, %v355
    %v357 = vrot.slane %v352, %v356
    %v375 = vunpack.c.l.b16 %v336
    %v376 = vunpack.c.l.b16 %v337
    %v377 = vunpack.c.l.b16 %v338
    %v378 = vunpack.c.l.b16 %v339
    %v379 = vunpack.c.l.b16 %v340
    %v380 = vunpack.c.l.b16 %v341
    %v381 = vunpack.c.l.b16 %v342
    %v382 = vunpack.c.l.b16 %v343
    %v383 = vunpack.c.l.b16 %v344
    %v384 = vunpack.c.l.b16 %v345
    %v385 = vunpack.c.l.b16 %v346
    %v386 = vunpack.c.l.b16 %v347
    %v387 = vunpack.c.l.b16 %v348
    %v388 = vunpack.c.l.b16 %v349
    %v389 = vunpack.c.l.b16 %v350
    %v390 = vunpack.c.l.b16 %v351
    %v391 = vpack.c.b16 %v376, %v375
    %v392 = vpack.c.b16 %v378, %v377
    %v393 = vpack.c.b16 %v380, %v379
    %v394 = vpack.c.b16 %v382, %v381
    %v395 = vpack.c.b16 %v384, %v383
    %v396 = vpack.c.b16 %v386, %v385
    %v397 = vpack.c.b16 %v388, %v387
    %v398 = vpack.c.b16 %v390, %v389
    %407 = vmatprep.subr.bf16.mxu0 0
    %408 = vmatpush1.bf16.msra.mxu0 %v398
    %409 = vmatprep.subr.bf16.mxu0 0
    %410 = vmatpush1.bf16.msra.mxu0 %v397
    %411 = vmatprep.subr.bf16.mxu0 0
    %412 = vmatpush1.bf16.msra.mxu0 %v396
    %413 = vmatprep.subr.bf16.mxu0 0
    %414 = vmatpush1.bf16.msra.mxu0 %v395
    %415 = vmatprep.subr.bf16.mxu0 0
    %416 = vmatpush1.bf16.msra.mxu0 %v394
    %417 = vmatprep.subr.bf16.mxu0 0
    %418 = vmatpush1.bf16.msra.mxu0 %v393
    %419 = vmatprep.subr.bf16.mxu0 0
    %420 = vmatpush1.bf16.msra.mxu0 %v392
    %421 = vmatprep.subr.bf16.mxu0 0
    %422 = vmatpush1.bf16.msra.mxu0 %v391
    %423 = vmatprep.subr.bf16.mxu0 0
    %424 = vmatpush2.bf16.msra.mxu0 0
    %425 = vmatprep.subr.bf16.mxu0 0
    %426 = vmatpush2.bf16.msra.mxu0 0
    %427 = vmatprep.subr.bf16.mxu0 0
    %428 = vmatpush2.bf16.msra.mxu0 0
    %429 = vmatprep.subr.bf16.mxu0 0
    %430 = vmatpush2.bf16.msra.mxu0 0
    %431 = vmatprep.subr.bf16.mxu0 0
    %432 = vmatpush2.bf16.msra.mxu0 0
    %433 = vmatprep.subr.bf16.mxu0 0
    %434 = vmatpush2.bf16.msra.mxu0 0
    %435 = vmatprep.subr.bf16.mxu0 0
    %436 = vmatpush2.bf16.msra.mxu0 0
    %437 = vmatprep.subr.bf16.mxu0 0
    %438 = vmatpush2.bf16.msra.mxu0 0
    %439 = vmatprep.mubr.bf16.mxu0 0
    %440 = vmatmul.mubr.bf16.gmra.mxu0 %v335
    %v441 = vpop.f32.mrf.mxu0
    %v442 = vadd.f32 %v357, %v441
    %v443 = vpop.f32.mrf.mxu0
    %v444 = vpop.f32.mrf.mxu0
    %v445 = vpop.f32.mrf.mxu0
    %446 = vdwg.mxu0
    %v447 = vpack.c.bf16 %v442, %v442
    %v448 = vmax.bf16 %v447, 0
    %v449 = vld [vmem:[#allocation7] sm:$0xf]
    %v450 = vld [vmem:[#allocation7 + $0x4] sm:$0xf]
    %v451 = vld [vmem:[#allocation7 + $0x8] sm:$0xf]
    %v452 = vld [vmem:[#allocation7 + $0xc] sm:$0xf]
    %v453 = vld [vmem:[#allocation7 + $0x10] sm:$0xf]
    %v454 = vld [vmem:[#allocation7 + $0x14] sm:$0xf]
    %v455 = vld [vmem:[#allocation7 + $0x18] sm:$0xf]
    %v456 = vld [vmem:[#allocation7 + $0x1c] sm:$0xf]
    %v457 = vld [vmem:[#allocation7 + $0x20] sm:$0xf]
    %v458 = vld [vmem:[#allocation7 + $0x24] sm:$0xf]
    %v459 = vld [vmem:[#allocation7 + $0x28] sm:$0xf]
    %v460 = vld [vmem:[#allocation7 + $0x2c] sm:$0xf]
    %v461 = vld [vmem:[#allocation7 + $0x30] sm:$0xf]
    %v462 = vld [vmem:[#allocation7 + $0x34] sm:$0xf]
    %v463 = vld [vmem:[#allocation7 + $0x38] sm:$0xf]
    %v464 = vld [vmem:[#allocation7 + $0x3c] sm:$0xf]
    %v465 = vld [vmem:[%s6] sm:$0x1]
    %v467 = vlaneseq
    %v468 = vshrl.u32 %v467, 7
    %v469 = vsub.s32 0, %v468
    %v470 = vrot.slane %v465, %v469
    %v488 = vunpack.c.l.b16 %v449
    %v489 = vunpack.c.l.b16 %v450
    %v490 = vunpack.c.l.b16 %v451
    %v491 = vunpack.c.l.b16 %v452
    %v492 = vunpack.c.l.b16 %v453
    %v493 = vunpack.c.l.b16 %v454
    %v494 = vunpack.c.l.b16 %v455
    %v495 = vunpack.c.l.b16 %v456
    %v496 = vunpack.c.l.b16 %v457
    %v497 = vunpack.c.l.b16 %v458
    %v498 = vunpack.c.l.b16 %v459
    %v499 = vunpack.c.l.b16 %v460
    %v500 = vunpack.c.l.b16 %v461
    %v501 = vunpack.c.l.b16 %v462
    %v502 = vunpack.c.l.b16 %v463
    %v503 = vunpack.c.l.b16 %v464
    %v504 = vpack.c.b16 %v489, %v488
    %v505 = vpack.c.b16 %v491, %v490
    %v506 = vpack.c.b16 %v493, %v492
    %v507 = vpack.c.b16 %v495, %v494
    %v508 = vpack.c.b16 %v497, %v496
    %v509 = vpack.c.b16 %v499, %v498
    %v510 = vpack.c.b16 %v501, %v500
    %v511 = vpack.c.b16 %v503, %v502
    %520 = vmatprep.subr.bf16.mxu0 0
    %521 = vmatpush1.bf16.msra.mxu0 %v511
    %522 = vmatprep.subr.bf16.mxu0 0
    %523 = vmatpush1.bf16.msra.mxu0 %v510
    %524 = vmatprep.subr.bf16.mxu0 0
    %525 = vmatpush1.bf16.msra.mxu0 %v509
    %526 = vmatprep.subr.bf16.mxu0 0
    %527 = vmatpush1.bf16.msra.mxu0 %v508
    %528 = vmatprep.subr.bf16.mxu0 0
    %529 = vmatpush1.bf16.msra.mxu0 %v507
    %530 = vmatprep.subr.bf16.mxu0 0
    %531 = vmatpush1.bf16.msra.mxu0 %v506
    %532 = vmatprep.subr.bf16.mxu0 0
    %533 = vmatpush1.bf16.msra.mxu0 %v505
    %534 = vmatprep.subr.bf16.mxu0 0
    %535 = vmatpush1.bf16.msra.mxu0 %v504
    %536 = vmatprep.subr.bf16.mxu0 0
    %537 = vmatpush2.bf16.msra.mxu0 0
    %538 = vmatprep.subr.bf16.mxu0 0
    %539 = vmatpush2.bf16.msra.mxu0 0
    %540 = vmatprep.subr.bf16.mxu0 0
    %541 = vmatpush2.bf16.msra.mxu0 0
    %542 = vmatprep.subr.bf16.mxu0 0
    %543 = vmatpush2.bf16.msra.mxu0 0
    %544 = vmatprep.subr.bf16.mxu0 0
    %545 = vmatpush2.bf16.msra.mxu0 0
    %546 = vmatprep.subr.bf16.mxu0 0
    %547 = vmatpush2.bf16.msra.mxu0 0
    %548 = vmatprep.subr.bf16.mxu0 0
    %549 = vmatpush2.bf16.msra.mxu0 0
    %550 = vmatprep.subr.bf16.mxu0 0
    %551 = vmatpush2.bf16.msra.mxu0 0
    %552 = vmatprep.mubr.bf16.mxu0 0
    %553 = vmatmul.mubr.bf16.gmra.mxu0 %v448
    %v554 = vpop.f32.mrf.mxu0
    %v555 = vadd.f32 %v470, %v554
    %v556 = vpop.f32.mrf.mxu0
    %v557 = vpop.f32.mrf.mxu0
    %v558 = vpop.f32.mrf.mxu0
    %559 = vdwg.mxu0
    %v560 = vpack.c.bf16 %v555, %v555
    %v561 = vmax.bf16 %v560, 0
    %v562 = vld [vmem:[#allocation9] sm:$0xf]
    %v563 = vld [vmem:[#allocation9 + $0x4] sm:$0xf]
    %v564 = vld [vmem:[#allocation9 + $0x8] sm:$0xf]
    %v565 = vld [vmem:[#allocation9 + $0xc] sm:$0xf]
    %v566 = vld [vmem:[#allocation9 + $0x10] sm:$0xf]
    %v567 = vld [vmem:[#allocation9 + $0x14] sm:$0xf]
    %v568 = vld [vmem:[#allocation9 + $0x18] sm:$0xf]
    %v569 = vld [vmem:[#allocation9 + $0x1c] sm:$0xf]
    %v570 = vld [vmem:[#allocation9 + $0x20] sm:$0xf]
    %v571 = vld [vmem:[#allocation9 + $0x24] sm:$0xf]
    %v572 = vld [vmem:[#allocation9 + $0x28] sm:$0xf]
    %v573 = vld [vmem:[#allocation9 + $0x2c] sm:$0xf]
    %v574 = vld [vmem:[#allocation9 + $0x30] sm:$0xf]
    %v575 = vld [vmem:[#allocation9 + $0x34] sm:$0xf]
    %v576 = vld [vmem:[#allocation9 + $0x38] sm:$0xf]
    %v577 = vld [vmem:[#allocation9 + $0x3c] sm:$0xf]
    %v578 = vld [vmem:[%s8] sm:$0x1]
    %v580 = vlaneseq
    %v581 = vshrl.u32 %v580, 7
    %v582 = vsub.s32 0, %v581
    %v583 = vrot.slane %v578, %v582
    %v601 = vunpack.c.l.b16 %v562
    %v602 = vunpack.c.l.b16 %v563
    %v603 = vunpack.c.l.b16 %v564
    %v604 = vunpack.c.l.b16 %v565
    %v605 = vunpack.c.l.b16 %v566
    %v606 = vunpack.c.l.b16 %v567
    %v607 = vunpack.c.l.b16 %v568
    %v608 = vunpack.c.l.b16 %v569
    %v609 = vunpack.c.l.b16 %v570
    %v610 = vunpack.c.l.b16 %v571
    %v611 = vunpack.c.l.b16 %v572
    %v612 = vunpack.c.l.b16 %v573
    %v613 = vunpack.c.l.b16 %v574
    %v614 = vunpack.c.l.b16 %v575
    %v615 = vunpack.c.l.b16 %v576
    %v616 = vunpack.c.l.b16 %v577
    %v617 = vpack.c.b16 %v602, %v601
    %v618 = vpack.c.b16 %v604, %v603
    %v619 = vpack.c.b16 %v606, %v605
    %v620 = vpack.c.b16 %v608, %v607
    %v621 = vpack.c.b16 %v610, %v609
    %v622 = vpack.c.b16 %v612, %v611
    %v623 = vpack.c.b16 %v614, %v613
    %v624 = vpack.c.b16 %v616, %v615
    %633 = vmatprep.subr.bf16.mxu0 0
    %634 = vmatpush1.bf16.msra.mxu0 %v624
    %635 = vmatprep.subr.bf16.mxu0 0
    %636 = vmatpush1.bf16.msra.mxu0 %v623
    %637 = vmatprep.subr.bf16.mxu0 0
    %638 = vmatpush1.bf16.msra.mxu0 %v622
    %639 = vmatprep.subr.bf16.mxu0 0
    %640 = vmatpush1.bf16.msra.mxu0 %v621
    %641 = vmatprep.subr.bf16.mxu0 0
    %642 = vmatpush1.bf16.msra.mxu0 %v620
    %643 = vmatprep.subr.bf16.mxu0 0
    %644 = vmatpush1.bf16.msra.mxu0 %v619
    %645 = vmatprep.subr.bf16.mxu0 0
    %646 = vmatpush1.bf16.msra.mxu0 %v618
    %647 = vmatprep.subr.bf16.mxu0 0
    %648 = vmatpush1.bf16.msra.mxu0 %v617
    %649 = vmatprep.subr.bf16.mxu0 0
    %650 = vmatpush2.bf16.msra.mxu0 0
    %651 = vmatprep.subr.bf16.mxu0 0
    %652 = vmatpush2.bf16.msra.mxu0 0
    %653 = vmatprep.subr.bf16.mxu0 0
    %654 = vmatpush2.bf16.msra.mxu0 0
    %655 = vmatprep.subr.bf16.mxu0 0
    %656 = vmatpush2.bf16.msra.mxu0 0
    %657 = vmatprep.subr.bf16.mxu0 0
    %658 = vmatpush2.bf16.msra.mxu0 0
    %659 = vmatprep.subr.bf16.mxu0 0
    %660 = vmatpush2.bf16.msra.mxu0 0
    %661 = vmatprep.subr.bf16.mxu0 0
    %662 = vmatpush2.bf16.msra.mxu0 0
    %663 = vmatprep.subr.bf16.mxu0 0
    %664 = vmatpush2.bf16.msra.mxu0 0
    %665 = vmatprep.mubr.bf16.mxu0 0
    %666 = vmatmul.mubr.bf16.gmra.mxu0 %v561
    %v667 = vpop.f32.mrf.mxu0
    %v668 = vadd.f32 %v583, %v667
    %v669 = vpop.f32.mrf.mxu0
    %v670 = vpop.f32.mrf.mxu0
    %v671 = vpop.f32.mrf.mxu0
    %672 = vdwg.mxu0
    %673 = vst [vmem:[%s9] sm:$0xff] %v668
    // Predicated region
    $region58: #{dqn_forward.1} parent=1 // pred_check
      _
    $region59: #{dqn_forward.1} parent=1 // pred_check_branch
      %675 = sbr.rel (0) target = $region61
    $region60: #{dqn_forward.1} parent=1 // pred_region
      _
    $region61: #{dqn_forward.1} parent=1 // pred_fallthru
      _
    // Predicated region
    $region62: #{dqn_forward.1} parent=1 // pred_check
      _
    $region63: #{dqn_forward.1} parent=1 // pred_check_branch
      %677 = sbr.rel (0) target = $region65
    $region64: #{dqn_forward.1} parent=1 // pred_region
      _
    $region65: #{dqn_forward.1} parent=1 // pred_fallthru
      _
    %678 = vsyncpa [#allocation3], 1
    %679 = vsyncpa [#allocation5], 1
    %680 = vsyncpa [#allocation8], 1

</llo_original>
